<compile_context>
chip_gen: v6e
topology: v6e:2x2x1
jax: 0.10.0
libtpu: 0.0.40
codegen_flags: <defaults>
</compile_context>

<pallas_src>
import functools

import jax
import jax.numpy as jnp
from jax.experimental import pallas as pl
from jax.experimental.pallas import tpu as pltpu

EPS = 1e-5


def _align8(n):
    return -(-n // 8) * 8


def _align128(n):
    return -(-n // 128) * 128


# ----------------------------------------------------------------------------
# Pallas kernel: embedding contribution + 3 folded Linear layers + 2 ReLUs
# ----------------------------------------------------------------------------
def tabular_mlp_kernel(xin_ref, pk_ref, out_ref, *, layout):
    R = layout["R"]
    n_cont = layout["n_cont"]
    W = layout["W"]
    o = layout["offs"]
    tb = xin_ref.shape[0]

    xin = xin_ref[...]                                  # (TB, 1 + n_cont) f32
    idx = xin[:, 0:1].astype(jnp.int32)                 # (TB, 1) small ints, exact in f32
    xc = xin[:, 1:1 + n_cont]                           # (TB, n_cont)

    # ---- static whole-vreg views into the single packed parameter buffer ----
    w1 = pk_ref[o["w1"]:o["w1"] + R + n_cont, :]        # (R + n_cont, W): [emb rows ; cont rows]
    b1 = pk_ref[o["b1"]:o["b1"] + 1, :]                 # (1, W)
    w2 = pk_ref[o["w2"]:o["w2"] + W, :]                 # (W, W)  bn1 folded, zero-padded
    b2 = pk_ref[o["b2"]:o["b2"] + 1, :]                 # (1, W)
    w3 = pk_ref[o["w3"]:o["w3"] + W, :]                 # (W, W)  bn2 folded, zero-padded
    b3 = pk_ref[o["b3"]:o["b3"] + 1, :]                 # (1, W)

    # ---- layer 1: fused [embedding | bn_cont(x_cont)] @ W1 + b1 -> ReLU ----
    if R <= 8:
        # Tiny vocab: embedding contribution via unrolled VPU select (co-issues with the MXU dot).
        emb = jnp.zeros((tb, W), jnp.float32)
        for r in range(R):
            emb = jnp.where(idx == r, w1[r:r + 1, :], emb)
        h = emb + jnp.dot(xc, w1[R:R + n_cont, :], preferred_element_type=jnp.float32) + b1
    else:
        # General path: single fused dot over [onehot | x_cont].
        # TODO(synk): for very large vocabularies switch to a scalar-prefetched row gather
        # (PrefetchScalarGridSpec) instead of the O(TB*R) one-hot (v7x VMEM = 64 MiB).
        onehot = (idx == jax.lax.broadcasted_iota(jnp.int32, (tb, R), 1)).astype(jnp.float32)
        x1 = jnp.concatenate([onehot, xc], axis=1)      # (TB, R + n_cont)
        h = jnp.dot(x1, w1, preferred_element_type=jnp.float32) + b1
    h = jnp.maximum(h, 0.0)

    # ---- layer 2 (bn1 folded): Linear -> ReLU ----
    h = jnp.maximum(jnp.dot(h, w2, preferred_element_type=jnp.float32) + b2, 0.0)

    # ---- output layer (bn2 folded), lane-dense (W-wide, cols >= out_sz are zero) ----
    out_ref[...] = jnp.dot(h, w3, preferred_element_type=jnp.float32) + b3


# ----------------------------------------------------------------------------
# Host-side parameter prep: fold BatchNorms + fuse embeddings + pack one buffer
# ----------------------------------------------------------------------------
def fold_and_pack(raw, emb_szs, n_cont, layers, out_sz, eps=EPS):
    h1, h2 = layers
    n_emb = sum(nf for _, nf in emb_szs)
    R = emb_szs[1][0]  # index column is x_cat[:, 1] for every table (faithful to the module)
    assert all(ni >= R for ni, _ in emb_szs), \
        "x_cat[:, 1] values must be valid row indices for every embedding table"

    W = max(128, _align128(max(h1, h2, out_sz)))  # lane-dense working width

    # Fused embedding table: rows [0, R) of every table, concat along features -> (R, n_emb)
    fused_tbl = jnp.concatenate([tbl[:R] for tbl in raw["emb_tables"]], axis=1)

    w1 = raw["w1"]
    w1e, w1c = w1[:n_emb], w1[n_emb:]

    # bn_cont folded into the continuous part of layer 1
    s_c = raw["bnc_g"] * jax.lax.rsqrt(raw["bnc_v"] + eps)
    t_c = raw["bnc_b"] - raw["bnc_m"] * s_c
    w1a = fused_tbl @ w1e                                 # (R, h1)     embedding rows -> layer1
    w1c_f = s_c[:, None] * w1c                            # (n_cont, h1)
    b1_f = raw["b1"] + t_c @ w1c                          # (h1,)

    # bn1 folded into layer 2
    s1 = raw["bn1_g"] * jax.lax.rsqrt(raw["bn1_v"] + eps)
    t1 = raw["bn1_b"] - raw["bn1_m"] * s1
    w2_f = s1[:, None] * raw["w2"]                        # (h1, h2)
    b2_f = raw["b2"] + t1 @ raw["w2"]                     # (h2,)

    # bn2 folded into the output layer
    s2 = raw["bn2_g"] * jax.lax.rsqrt(raw["bn2_v"] + eps)
    t2 = raw["bn2_b"] - raw["bn2_m"] * s2
    w3_f = s2[:, None] * raw["w3"]                        # (h2, out_sz)
    b3_f = raw["b3"] + t2 @ raw["w3"]                     # (out_sz,)

    def padc(a):  # zero-pad columns to W
        return jnp.pad(a, ((0, 0), (0, W - a.shape[1])))

    # Layer-1 weights packed contiguously (embedding rows directly above continuous rows).
    w1_full = padc(jnp.concatenate([w1a, w1c_f], axis=0))            # (R + n_cont, W)
    # Layer-2/3 weights zero-padded to (W, W) so the chained dots use whole-vreg operands.
    w2_full = jnp.pad(w2_f, ((0, W - h1), (0, W - h2)))              # (W, W)
    w3_full = jnp.pad(w3_f, ((0, W - h2), (0, W - out_sz)))          # (W, W)
    b1p, b2p, b3p = padc(b1_f[None, :]), padc(b2_f[None, :]), padc(b3_f[None, :])

    segs = [("w1", w1_full), ("b1", b1p), ("w2", w2_full), ("b2", b2p),
            ("w3", w3_full), ("b3", b3p)]
    offs, row = {}, 0
    for name, arr in segs:
        offs[name] = row
        row = _align8(row + arr.shape[0])                 # sublane-aligned segment starts
    total_rows = row

    pk = jnp.zeros((total_rows, W), jnp.float32)
    for name, arr in segs:
        pk = pk.at[offs[name]:offs[name] + arr.shape[0], :].set(arr.astype(jnp.float32))

    layout = dict(R=R, n_cont=n_cont, W=W, out_sz=out_sz, offs=offs, pk_rows=total_rows)
    return pk, layout


def _pick_block_b(batch):
    # Per-step VMEM footprint is tiny, so use big blocks (fewer fixed-cost grid steps),
    # but keep >= 2 grid steps for batch > 16 so v7x's two TensorCores both get work.
    cap = 2048
    if batch <= 16:
        return _align8(batch)
    return min(cap, _align8(pl.cdiv(batch, 2)))


# ----------------------------------------------------------------------------
# Wrapper
# ----------------------------------------------------------------------------
def tabular_forward(x_cat, x_cont, packed_params, layout):
    batch = x_cat.shape[0]
    n_cont = layout["n_cont"]
    out_sz = layout["out_sz"]
    W = layout["W"]
    pk_rows = layout["pk_rows"]

    # Faithful to the original forward: column 1 feeds every embedding table.
    # idx is merged into the activation DMA as float32 column 0 (one fat DMA per step).
    idx_f = x_cat[:, 1:2].astype(jnp.float32)
    xin = jnp.concatenate([idx_f, x_cont.astype(jnp.float32)], axis=1)   # (B, 1 + n_cont)

    block_b = _pick_block_b(batch)
    padded = pl.cdiv(batch, block_b) * block_b
    if padded != batch:
        xin = jnp.pad(xin, ((0, padded - batch), (0, 0)))  # pad idx = 0 (valid row), rows discarded
    grid = (padded // block_b,)

    flops = 2 * padded * ((layout["R"] + n_cont) * W + W * W + W * W)
    bytes_accessed = 4 * (padded * (1 + n_cont) + pk_rows * W + padded * W)

    out = pl.pallas_call(
        functools.partial(tabular_mlp_kernel, layout=layout),
        out_shape=jax.ShapeDtypeStruct((padded, W), jnp.float32),
        grid=grid,
        in_specs=[
            pl.BlockSpec((block_b, 1 + n_cont), lambda i: (i, 0)),   # idx + continuous features
            pl.BlockSpec((pk_rows, W), lambda i: (0, 0)),            # packed params (resident)
        ],
        out_specs=pl.BlockSpec((block_b, W), lambda i: (i, 0)),      # lane-dense (128-wide) output
        compiler_params=pltpu.CompilerParams(
            dimension_semantics=("parallel",),
            vmem_limit_bytes=32 << 20),
        cost_estimate=pl.CostEstimate(
            flops=flops, transcendentals=0, bytes_accessed=bytes_accessed),
    )(xin, packed_params)

    return out[:batch, :out_sz]


# ----------------------------------------------------------------------------
# Pure-JAX reference (unfolded, mirrors the PyTorch module in eval mode)
# ----------------------------------------------------------------------------
def reference_forward(x_cat, x_cont, raw):
    idx = x_cat[:, 1]
    x_emb = jnp.concatenate([tbl[idx] for tbl in raw["emb_tables"]], axis=1)
    xc = (x_cont - raw["bnc_m"]) / jnp.sqrt(raw["bnc_v"] + EPS) * raw["bnc_g"] + raw["bnc_b"]
    x = jnp.concatenate([x_emb, xc], axis=1)
    h = jnp.maximum(x @ raw["w1"] + raw["b1"], 0.0)
    h = (h - raw["bn1_m"]) / jnp.sqrt(raw["bn1_v"] + EPS) * raw["bn1_g"] + raw["bn1_b"]
    h = jnp.maximum(h @ raw["w2"] + raw["b2"], 0.0)
    h = (h - raw["bn2_m"]) / jnp.sqrt(raw["bn2_v"] + EPS) * raw["bn2_g"] + raw["bn2_b"]
    return h @ raw["w3"] + raw["b3"]


# ----------------------------------------------------------------------------
# Deterministic parameter init (PyTorch-like distributions), unfolded form
# ----------------------------------------------------------------------------
def init_raw_params(key, emb_szs, n_cont, layers, out_sz):
    keys = iter(jax.random.split(key, 64))
    p = {}
    p["emb_tables"] = [jax.random.normal(next(keys), (ni, nf), jnp.float32)
                       for ni, nf in emb_szs]
    n_emb = sum(nf for _, nf in emb_szs)

    def bn(n):
        g = jnp.ones((n,), jnp.float32)
        b = jnp.zeros((n,), jnp.float32)
        m = 0.1 * jax.random.normal(next(keys), (n,), jnp.float32)
        v = 1.0 + 0.1 * jax.random.uniform(next(keys), (n,), jnp.float32)
        return g, b, m, v

    def linear(n_in, n_out):
        k = 1.0 / jnp.sqrt(jnp.float32(n_in))
        w = jax.random.uniform(next(keys), (n_in, n_out), jnp.float32, -k, k)
        b = jax.random.uniform(next(keys), (n_out,), jnp.float32, -k, k)
        return w, b

    p["bnc_g"], p["bnc_b"], p["bnc_m"], p["bnc_v"] = bn(n_cont)
    h1, h2 = layers
    p["w1"], p["b1"] = linear(n_emb + n_cont, h1)
    p["bn1_g"], p["bn1_b"], p["bn1_m"], p["bn1_v"] = bn(h1)
    p["w2"], p["b2"] = linear(h1, h2)
    p["bn2_g"], p["bn2_b"], p["bn2_m"], p["bn2_v"] = bn(h2)
    p["w3"], p["b3"] = linear(h2, out_sz)
    return p


def make_inputs(key, cat_szs, n_cont, batch):
    k_cat, k_cont = jax.random.split(key)
    cat_keys = jax.random.split(k_cat, len(cat_szs))
    x_cat = jnp.concatenate(
        [jax.random.randint(kk, (batch, 1), 0, sz, jnp.int32)
         for sz, kk in zip(cat_szs, cat_keys)], axis=1)
    x_cont = jax.random.normal(k_cont, (batch, n_cont), jnp.float32)
    return x_cat, x_cont


if __name__ == "__main__":
    # Small synthetic config consistent with the module (7 categorical columns).
    cat_szs = [10, 2, 16, 16, 7, 9, 15]
    emb_szs = [(s, min(50, (s + 1) // 2)) for s in cat_szs]      # n_emb = 39
    n_cont = 6
    layers = [32, 16]
    out_sz = 2

    key = jax.random.PRNGKey(0)
    k_par, k_in_small, k_in_big = jax.random.split(key, 3)

    raw = init_raw_params(k_par, emb_szs, n_cont, layers, out_sz)
    packed, layout = fold_and_pack(raw, emb_szs, n_cont, layers, out_sz)

    # TODO(synk): Dropout / BatchNorm training-mode statistics are not modeled
    # (eval/inference semantics only, matching the deterministic forward pass).

    # --- small batch (single grid step) ---
    x_cat, x_cont = make_inputs(k_in_small, cat_szs, n_cont, batch=8)
    out = jax.block_until_ready(tabular_forward(x_cat, x_cont, packed, layout))
    ref = reference_forward(x_cat, x_cont, raw)
    assert out.shape == (8, out_sz)
    assert jnp.allclose(out, ref, atol=1e-4, rtol=1e-4), "small-batch mismatch vs reference"

    # --- larger, non-divisible batch (exercises parallel grid + tail padding) ---
    x_cat_b, x_cont_b = make_inputs(k_in_big, cat_szs, n_cont, batch=1000)
    out_b = jax.block_until_ready(tabular_forward(x_cat_b, x_cont_b, packed, layout))
    ref_b = reference_forward(x_cat_b, x_cont_b, raw)
    assert out_b.shape == (1000, out_sz)
    assert jnp.allclose(out_b, ref_b, atol=1e-4, rtol=1e-4), "batched mismatch vs reference"

    print("KERNEL_OK")
</pallas_src>

<mosaic_0001>
module attributes {stable_mosaic.version = 11 : i64} {
  func.func @tabular_mlp_kernel(%arg0: i32, %arg1: memref<8x7xf32, #tpu.memory_space<vmem>>, %arg2: memref<288x128xf32, #tpu.memory_space<vmem>>, %arg3: memref<8x128xf32, #tpu.memory_space<vmem>>) attributes {dimension_semantics = [#tpu.dimension_semantics<parallel>], iteration_bounds = array<i64: 1>, scalar_prefetch = 0 : i64, scratch_operands = 0 : i64, tpu.core_type = #tpu.core_type<tc>, window_params = [{transform_indices = @transform_0, window_bounds = array<i64: 8, 7>}, {pipeline_mode = #tpu.pipeline_mode<synchronous>, transform_indices = @transform_1, window_bounds = array<i64: 288, 128>}, {transform_indices = @transform_2, window_bounds = array<i64: 8, 128>}]} {
    %c0 = arith.constant 0 : index
    %c0_0 = arith.constant 0 : index
    %0 = vector.load %arg1[%c0, %c0_0] : memref<8x7xf32, #tpu.memory_space<vmem>>, vector<8x7xf32>
    %1 = vector.extract_strided_slice %0 {offsets = [0, 0], sizes = [8, 1], strides = [1, 1]} : vector<8x7xf32> to vector<8x1xf32>
    %2 = arith.fptosi %1 : vector<8x1xf32> to vector<8x1xi32>
    %3 = vector.extract_strided_slice %0 {offsets = [0, 1], sizes = [8, 6], strides = [1, 1]} : vector<8x7xf32> to vector<8x6xf32>
    %c0_1 = arith.constant 0 : index
    %c0_2 = arith.constant 0 : index
    %4 = vector.load %arg2[%c0_1, %c0_2] : memref<288x128xf32, #tpu.memory_space<vmem>>, vector<8x128xf32>
    %c8 = arith.constant 8 : index
    %c0_3 = arith.constant 0 : index
    %5 = vector.load %arg2[%c8, %c0_3] : memref<288x128xf32, #tpu.memory_space<vmem>>, vector<1x128xf32>
    %c16 = arith.constant 16 : index
    %c0_4 = arith.constant 0 : index
    %6 = vector.load %arg2[%c16, %c0_4] : memref<288x128xf32, #tpu.memory_space<vmem>>, vector<128x128xf32>
    %c144 = arith.constant 144 : index
    %c0_5 = arith.constant 0 : index
    %7 = vector.load %arg2[%c144, %c0_5] : memref<288x128xf32, #tpu.memory_space<vmem>>, vector<1x128xf32>
    %c152 = arith.constant 152 : index
    %c0_6 = arith.constant 0 : index
    %8 = vector.load %arg2[%c152, %c0_6] : memref<288x128xf32, #tpu.memory_space<vmem>>, vector<128x128xf32>
    %c280 = arith.constant 280 : index
    %c0_7 = arith.constant 0 : index
    %9 = vector.load %arg2[%c280, %c0_7] : memref<288x128xf32, #tpu.memory_space<vmem>>, vector<1x128xf32>
    %cst = arith.constant 0.000000e+00 : f32
    %10 = vector.broadcast %cst : f32 to vector<8x128xf32>
    %c0_i32 = arith.constant 0 : i32
    %11 = vector.broadcast %c0_i32 : i32 to vector<8x1xi32>
    %12 = arith.cmpi eq, %2, %11 : vector<8x1xi32>
    %13 = vector.extract_strided_slice %4 {offsets = [0, 0], sizes = [1, 128], strides = [1, 1]} : vector<8x128xf32> to vector<1x128xf32>
    %14 = vector.shape_cast %12 : vector<8x1xi1> to vector<8x1xi1>
    %15 = vector.broadcast %14 : vector<8x1xi1> to vector<8x128xi1>
    %16 = vector.shape_cast %13 : vector<1x128xf32> to vector<1x128xf32>
    %17 = vector.broadcast %16 : vector<1x128xf32> to vector<8x128xf32>
    %18 = arith.select %15, %17, %10 : vector<8x128xi1>, vector<8x128xf32>
    %c1_i32 = arith.constant 1 : i32
    %19 = vector.broadcast %c1_i32 : i32 to vector<8x1xi32>
    %20 = arith.cmpi eq, %2, %19 : vector<8x1xi32>
    %21 = vector.extract_strided_slice %4 {offsets = [1, 0], sizes = [1, 128], strides = [1, 1]} : vector<8x128xf32> to vector<1x128xf32>
    %22 = vector.shape_cast %20 : vector<8x1xi1> to vector<8x1xi1>
    %23 = vector.broadcast %22 : vector<8x1xi1> to vector<8x128xi1>
    %24 = vector.shape_cast %21 : vector<1x128xf32> to vector<1x128xf32>
    %25 = vector.broadcast %24 : vector<1x128xf32> to vector<8x128xf32>
    %26 = arith.select %23, %25, %18 : vector<8x128xi1>, vector<8x128xf32>
    %27 = vector.extract_strided_slice %4 {offsets = [2, 0], sizes = [6, 128], strides = [1, 1]} : vector<8x128xf32> to vector<6x128xf32>
    %cst_8 = arith.constant dense<0.000000e+00> : vector<8x128xf32>
    %28 = tpu.matmul %3, %27, %cst_8 {dimension_numbers = #tpu.dot_dimension_numbers<[1], [0], [0], [1], [0, 0, 1, 1], [], []>} : vector<8x6xf32>, vector<6x128xf32>, vector<8x128xf32> -> vector<8x128xf32>
    %29 = arith.addf %26, %28 : vector<8x128xf32>
    %30 = vector.broadcast %5 : vector<1x128xf32> to vector<8x128xf32>
    %31 = arith.addf %29, %30 : vector<8x128xf32>
    %cst_9 = arith.constant 0.000000e+00 : f32
    %32 = vector.broadcast %cst_9 : f32 to vector<8x128xf32>
    %33 = arith.maximumf %31, %32 : vector<8x128xf32>
    %cst_10 = arith.constant dense<0.000000e+00> : vector<8x128xf32>
    %34 = tpu.matmul %33, %6, %cst_10 {dimension_numbers = #tpu.dot_dimension_numbers<[1], [0], [0], [1], [0, 0, 1, 1], [], []>} : vector<8x128xf32>, vector<128x128xf32>, vector<8x128xf32> -> vector<8x128xf32>
    %35 = vector.broadcast %7 : vector<1x128xf32> to vector<8x128xf32>
    %36 = arith.addf %34, %35 : vector<8x128xf32>
    %cst_11 = arith.constant 0.000000e+00 : f32
    %37 = vector.broadcast %cst_11 : f32 to vector<8x128xf32>
    %38 = arith.maximumf %36, %37 : vector<8x128xf32>
    %cst_12 = arith.constant dense<0.000000e+00> : vector<8x128xf32>
    %39 = tpu.matmul %38, %8, %cst_12 {dimension_numbers = #tpu.dot_dimension_numbers<[1], [0], [0], [1], [0, 0, 1, 1], [], []>} : vector<8x128xf32>, vector<128x128xf32>, vector<8x128xf32> -> vector<8x128xf32>
    %40 = vector.broadcast %9 : vector<1x128xf32> to vector<8x128xf32>
    %41 = arith.addf %39, %40 : vector<8x128xf32>
    %c0_13 = arith.constant 0 : index
    %c0_14 = arith.constant 0 : index
    %42 = vector.load %arg3[%c0_13, %c0_14] : memref<8x128xf32, #tpu.memory_space<vmem>>, vector<8x128xf32>
    tpu.vector_store %arg3[%c0_13, %c0_14], %41 {strides = array<i32>} : memref<8x128xf32, #tpu.memory_space<vmem>>, vector<8x128xf32>,
    return
  }
  func.func @transform_0(%arg0: i32) -> (i32, i32) {
    %c0_i32 = arith.constant 0 : i32
    %c0_i32_0 = arith.constant 0 : i32
    return %arg0, %c0_i32 : i32, i32
  }
  func.func @transform_1(%arg0: i32) -> (i32, i32) {
    %c0_i32 = arith.constant 0 : i32
    %c0_i32_0 = arith.constant 0 : i32
    %c0_i32_1 = arith.constant 0 : i32
    return %c0_i32, %c0_i32_0 : i32, i32
  }
  func.func @transform_2(%arg0: i32) -> (i32, i32) {
    %c0_i32 = arith.constant 0 : i32
    %c0_i32_0 = arith.constant 0 : i32
    return %arg0, %c0_i32 : i32, i32
  }
}

</mosaic_0001>

<llo_original>
// kernel: tpu_custom_call.1
$region0: #{tpu_custom_call.1}
  #allocation0 [shape = 'u32[]', space=smem, size = 0x4, offset = 0x4, fixed_abs, tag = 'smem constant byte address 0x4 - core index']
  #allocation1 [shape = 'u32[144,128]{1,0:T(1,128)}', space=vmem, size = 0x12000, scoped, tag = 'internal scratch']
  %s0 = inlined_call_operand.hbm [shape: f32[8,7], index: 0, kind: input, shape index: {}]
  %s1 = inlined_call_operand.hbm [shape: f32[288,128], index: 1, kind: input, shape index: {}]
  %s2 = inlined_call_operand.hbm [shape: f32[8,128], index: 2, kind: output, shape index: {}]
  %s3 = sld [smem:[#allocation0]]
  $region26: #{tpu_custom_call.1} parent=0
    _
  %s5 = ssub.s32 1, %s3
  %s6 = scalar_select 0, %s5, %s3
  $region1: #{tpu_custom_call.1} parent=0
    #allocation2 [shape = 'u8[4096]{0}', space=vmem, size = 0x1000, scoped, tag = 'input window, operand 0, single buffered']
    #allocation3 [shape = 's32[1]{0}', space=sflag, size = 0x4, scoped, tag = 'scoped memory for tpu_custom_call.1']
    #allocation4 [shape = 's32[1]{0}', space=sflag, size = 0x4, scoped, tag = 'scoped memory for tpu_custom_call.1']
    #allocation5 [shape = 'u8[147456]{0}', space=vmem, size = 0x24000, scoped, tag = 'input window, operand 1, single buffered']
    #allocation6 [shape = 's32[1]{0}', space=sflag, size = 0x4, scoped, tag = 'scoped memory for tpu_custom_call.1']
    #allocation7 [shape = 'u8[4096]{0}', space=vmem, size = 0x1000, scoped, tag = 'output window, operand 0, single buffered']
    %7 = vsyncpa [#allocation3], 0
    %8 = vsyncpa [#allocation6], 0
    %9 = vsyncpa [#allocation4], 0
    // Predicated region
    $region2: #{tpu_custom_call.1} parent=1 // pred_check
      _
    $region3: #{tpu_custom_call.1} parent=1 // pred_check_branch
      %11 = sbr.rel (0) target = $region5
    $region4: #{tpu_custom_call.1} parent=1 // pred_region
      %s13 = ssub.s32 128, 128
      %14 = vsyncadd [#allocation3], %s13
      %s16 = sshll.u32 [#allocation2], 4
      %s17 = int_to_ptr.vmem [resolvable:$true] %s16
      %19 = dma.hbm_to_vmem [thread:$0]  %s0, 128, %s17, [#allocation3]
    $region5: #{tpu_custom_call.1} parent=1 // pred_fallthru
      _
    // Predicated region
    $region6: #{tpu_custom_call.1} parent=1 // pred_check
      _
    $region7: #{tpu_custom_call.1} parent=1 // pred_check_branch
      %21 = sbr.rel (0) target = $region9
    $region8: #{tpu_custom_call.1} parent=1 // pred_region
      %s23 = ssub.s32 4608, 4608
      %24 = vsyncadd [#allocation6], %s23
      %s25 = sshll.u32 [#allocation5], 4
      %s26 = int_to_ptr.vmem [resolvable:$true] %s25
      %31 = dma.hbm_to_vmem [thread:$0]  %s1, 4608, %s26, [#allocation6], 128, 128, 8
    $region9: #{tpu_custom_call.1} parent=1 // pred_fallthru
      _
    // Predicated region
    $region10: #{tpu_custom_call.1} parent=1 // pred_check
      _
    $region11: #{tpu_custom_call.1} parent=1 // pred_check_branch
      %33 = sbr.rel (0) target = $region13
    $region12: #{tpu_custom_call.1} parent=1 // pred_region
      %34 = dma.done [#allocation3], 128
    $region13: #{tpu_custom_call.1} parent=1 // pred_fallthru
      _
    // Predicated region
    $region14: #{tpu_custom_call.1} parent=1 // pred_check
      _
    $region15: #{tpu_custom_call.1} parent=1 // pred_check_branch
      %36 = sbr.rel (0) target = $region17
    $region16: #{tpu_custom_call.1} parent=1 // pred_region
      %37 = dma.done [#allocation6], 4608
    $region17: #{tpu_custom_call.1} parent=1 // pred_fallthru
      _
    %v38 = vld [vmem:[#allocation2] sm:$0xff]
    %v39 = vcvt.f32.s32.to.zero.pseudo %v38
    %v40 = vld [vmem:[#allocation5] sm:$0xff]
    %v41 = vld [vmem:[#allocation5 + $0x8] sm:$0x1]
    %v42 = vld [vmem:[#allocation5 + $0x10] sm:$0xff]
    %v43 = vld [vmem:[#allocation5 + $0x18] sm:$0xff]
    %v44 = vld [vmem:[#allocation5 + $0x20] sm:$0xff]
    %v45 = vld [vmem:[#allocation5 + $0x28] sm:$0xff]
    %v46 = vld [vmem:[#allocation5 + $0x30] sm:$0xff]
    %v47 = vld [vmem:[#allocation5 + $0x38] sm:$0xff]
    %v48 = vld [vmem:[#allocation5 + $0x40] sm:$0xff]
    %v49 = vld [vmem:[#allocation5 + $0x48] sm:$0xff]
    %v50 = vld [vmem:[#allocation5 + $0x50] sm:$0xff]
    %v51 = vld [vmem:[#allocation5 + $0x58] sm:$0xff]
    %v52 = vld [vmem:[#allocation5 + $0x60] sm:$0xff]
    %v53 = vld [vmem:[#allocation5 + $0x68] sm:$0xff]
    %v54 = vld [vmem:[#allocation5 + $0x70] sm:$0xff]
    %v55 = vld [vmem:[#allocation5 + $0x78] sm:$0xff]
    %v56 = vld [vmem:[#allocation5 + $0x80] sm:$0xff]
    %v57 = vld [vmem:[#allocation5 + $0x88] sm:$0xff]
    %v58 = vld [vmem:[#allocation5 + $0x90] sm:$0x1]
    %v59 = vld [vmem:[#allocation5 + $0x98] sm:$0xff]
    %v60 = vld [vmem:[#allocation5 + $0xa0] sm:$0xff]
    %v61 = vld [vmem:[#allocation5 + $0xa8] sm:$0xff]
    %v62 = vld [vmem:[#allocation5 + $0xb0] sm:$0xff]
    %v63 = vld [vmem:[#allocation5 + $0xb8] sm:$0xff]
    %v64 = vld [vmem:[#allocation5 + $0xc0] sm:$0xff]
    %v65 = vld [vmem:[#allocation5 + $0xc8] sm:$0xff]
    %v66 = vld [vmem:[#allocation5 + $0xd0] sm:$0xff]
    %v67 = vld [vmem:[#allocation5 + $0xd8] sm:$0xff]
    %v68 = vld [vmem:[#allocation5 + $0xe0] sm:$0xff]
    %v69 = vld [vmem:[#allocation5 + $0xe8] sm:$0xff]
    %v70 = vld [vmem:[#allocation5 + $0xf0] sm:$0xff]
    %v71 = vld [vmem:[#allocation5 + $0xf8] sm:$0xff]
    %v72 = vld [vmem:[#allocation5 + $0x100] sm:$0xff]
    %v73 = vld [vmem:[#allocation5 + $0x108] sm:$0xff]
    %v74 = vld [vmem:[#allocation5 + $0x110] sm:$0xff]
    %v75 = vld [vmem:[#allocation5 + $0x118] sm:$0x1]
    %vm76 = vcmp.eq.s32.totalorder %v39, 0
    %v77 = vsel %vm76, 1, 0
    %78 = vset.pattern.permute.xlu0 0
    %79 = vperm.xlu0 %78, %v77
    %v80 = vpop.permute.xlu0 %79
    %vm81 = vcmp.eq.s32.totalorder %v80, 1
    %v82 = vlaneseq
    %v83 = vshrl.u32 %v82, 7
    %v84 = vsub.s32 0, %v83
    %v85 = vrot.slane %v40, %v84
    %v86 = vsel %vm81, %v85, 0.0
    %vm87 = vcmp.eq.s32.totalorder %v39, 1
    %v88 = vsel %vm87, 1, 0
    %89 = vset.pattern.permute.xlu0 0
    %90 = vperm.xlu0 %89, %v88
    %v91 = vpop.permute.xlu0 %90
    %vm92 = vcmp.eq.s32.totalorder %v91, 1
    %v93 = vlaneseq
    %v94 = vshrl.u32 %v93, 7
    %v95 = vsub.s32 1, %v94
    %v96 = vrot.slane %v40, %v95
    %v97 = vsel %vm92, %v96, %v86
    %99 = vrot.lane.b32.xlu0 %v38, 127
    %v100 = vpop.permute.xlu0 %99
    %v102 = vrot.slane %v40, 2
    %vm103 = vcmask 48128
    %v104 = vsel %vm103, %v100, 0
    %vm106 = vcmask 1045504
    %v107 = vsel %vm106, %v102, 0
    %109 = vmatprep.subr.mxu0 0.0
    %110 = vmatpush1.msra.mxu0 0.0
    %111 = vmatprep.subr.mxu0 0.0
    %112 = vmatpush1.msra.mxu0 0.0
    %113 = vmatprep.subr.mxu0 0.0
    %114 = vmatpush1.msra.mxu0 0.0
    %115 = vmatprep.subr.mxu0 0.0
    %116 = vmatpush1.msra.mxu0 0.0
    %117 = vmatprep.subr.mxu0 0.0
    %118 = vmatpush1.msra.mxu0 0.0
    %119 = vmatprep.subr.mxu0 0.0
    %120 = vmatpush1.msra.mxu0 0.0
    %121 = vmatprep.subr.mxu0 0.0
    %122 = vmatpush1.msra.mxu0 0.0
    %123 = vmatprep.subr.mxu0 0.0
    %124 = vmatpush1.msra.mxu0 0.0
    %125 = vmatprep.subr.mxu0 0.0
    %126 = vmatpush1.msra.mxu0 0.0
    %127 = vmatprep.subr.mxu0 0.0
    %128 = vmatpush1.msra.mxu0 0.0
    %129 = vmatprep.subr.mxu0 0.0
    %130 = vmatpush1.msra.mxu0 0.0
    %131 = vmatprep.subr.mxu0 0.0
    %132 = vmatpush1.msra.mxu0 0.0
    %133 = vmatprep.subr.mxu0 0.0
    %134 = vmatpush1.msra.mxu0 0.0
    %135 = vmatprep.subr.mxu0 0.0
    %136 = vmatpush1.msra.mxu0 0.0
    %137 = vmatprep.subr.mxu0 0.0
    %138 = vmatpush1.msra.mxu0 0.0
    %139 = vmatprep.subr.mxu0 0.0
    %140 = vmatpush1.msra.mxu0 %v107
    %141 = vmatprep.subr.mxu0 0.0
    %142 = vmatpush2.msra.mxu0 0.0
    %143 = vmatprep.subr.mxu0 0.0
    %144 = vmatpush2.msra.mxu0 0.0
    %145 = vmatprep.subr.mxu0 0.0
    %146 = vmatpush2.msra.mxu0 0.0
    %147 = vmatprep.subr.mxu0 0.0
    %148 = vmatpush2.msra.mxu0 0.0
    %149 = vmatprep.subr.mxu0 0.0
    %150 = vmatpush2.msra.mxu0 0.0
    %151 = vmatprep.subr.mxu0 0.0
    %152 = vmatpush2.msra.mxu0 0.0
    %153 = vmatprep.subr.mxu0 0.0
    %154 = vmatpush2.msra.mxu0 0.0
    %155 = vmatprep.subr.mxu0 0.0
    %156 = vmatpush2.msra.mxu0 0.0
    %157 = vmatprep.subr.mxu0 0.0
    %158 = vmatpush2.msra.mxu0 0.0
    %159 = vmatprep.subr.mxu0 0.0
    %160 = vmatpush2.msra.mxu0 0.0
    %161 = vmatprep.subr.mxu0 0.0
    %162 = vmatpush2.msra.mxu0 0.0
    %163 = vmatprep.subr.mxu0 0.0
    %164 = vmatpush2.msra.mxu0 0.0
    %165 = vmatprep.subr.mxu0 0.0
    %166 = vmatpush2.msra.mxu0 0.0
    %167 = vmatprep.subr.mxu0 0.0
    %168 = vmatpush2.msra.mxu0 0.0
    %169 = vmatprep.subr.mxu0 0.0
    %170 = vmatpush2.msra.mxu0 0.0
    %171 = vmatprep.subr.mxu0 0.0
    %172 = vmatpush2.msra.mxu0 0.0
    %173 = vmatprep.mubr.f32.mxu0 0.0
    %174 = vmatmul.mubr.f32.gmra.mxu0 %v104
    %v175 = vpop.f32.mrf.mxu0
    %v176 = vadd.f32 0.0, %v175
    %v177 = vpop.f32.mrf.mxu0
    %178 = vdwg.mxu0
    %v179 = vadd.f32 %v97, %v176
    %v180 = vlaneseq
    %v181 = vshrl.u32 %v180, 7
    %v182 = vsub.s32 0, %v181
    %v183 = vrot.slane %v41, %v182
    %v184 = vadd.f32 %v179, %v183
    %v185 = vmax.f32 %v184, 0.0
    %v186 = vlaneseq
    %v187 = vshrl.u32 %v186, 7
    %v188 = vsub.s32 0, %v187
    %v189 = vrot.slane %v58, %v188
    %190 = vmatprep.subr.mxu0 0.0
    %191 = vmatpush1.msra.mxu0 %v57
    %192 = vmatprep.subr.mxu0 0.0
    %193 = vmatpush1.msra.mxu0 %v56
    %194 = vmatprep.subr.mxu0 0.0
    %195 = vmatpush1.msra.mxu0 %v55
    %196 = vmatprep.subr.mxu0 0.0
    %197 = vmatpush1.msra.mxu0 %v54
    %198 = vmatprep.subr.mxu0 0.0
    %199 = vmatpush1.msra.mxu0 %v53
    %200 = vmatprep.subr.mxu0 0.0
    %201 = vmatpush1.msra.mxu0 %v52
    %202 = vmatprep.subr.mxu0 0.0
    %203 = vmatpush1.msra.mxu0 %v51
    %204 = vmatprep.subr.mxu0 0.0
    %205 = vmatpush1.msra.mxu0 %v50
    %206 = vmatprep.subr.mxu0 0.0
    %207 = vmatpush1.msra.mxu0 %v49
    %208 = vmatprep.subr.mxu0 0.0
    %209 = vmatpush1.msra.mxu0 %v48
    %210 = vmatprep.subr.mxu0 0.0
    %211 = vmatpush1.msra.mxu0 %v47
    %212 = vmatprep.subr.mxu0 0.0
    %213 = vmatpush1.msra.mxu0 %v46
    %214 = vmatprep.subr.mxu0 0.0
    %215 = vmatpush1.msra.mxu0 %v45
    %216 = vmatprep.subr.mxu0 0.0
    %217 = vmatpush1.msra.mxu0 %v44
    %218 = vmatprep.subr.mxu0 0.0
    %219 = vmatpush1.msra.mxu0 %v43
    %220 = vmatprep.subr.mxu0 0.0
    %221 = vmatpush1.msra.mxu0 %v42
    %222 = vmatprep.subr.mxu0 0.0
    %223 = vmatpush2.msra.mxu0 0.0
    %224 = vmatprep.subr.mxu0 0.0
    %225 = vmatpush2.msra.mxu0 0.0
    %226 = vmatprep.subr.mxu0 0.0
    %227 = vmatpush2.msra.mxu0 0.0
    %228 = vmatprep.subr.mxu0 0.0
    %229 = vmatpush2.msra.mxu0 0.0
    %230 = vmatprep.subr.mxu0 0.0
    %231 = vmatpush2.msra.mxu0 0.0
    %232 = vmatprep.subr.mxu0 0.0
    %233 = vmatpush2.msra.mxu0 0.0
    %234 = vmatprep.subr.mxu0 0.0
    %235 = vmatpush2.msra.mxu0 0.0
    %236 = vmatprep.subr.mxu0 0.0
    %237 = vmatpush2.msra.mxu0 0.0
    %238 = vmatprep.subr.mxu0 0.0
    %239 = vmatpush2.msra.mxu0 0.0
    %240 = vmatprep.subr.mxu0 0.0
    %241 = vmatpush2.msra.mxu0 0.0
    %242 = vmatprep.subr.mxu0 0.0
    %243 = vmatpush2.msra.mxu0 0.0
    %244 = vmatprep.subr.mxu0 0.0
    %245 = vmatpush2.msra.mxu0 0.0
    %246 = vmatprep.subr.mxu0 0.0
    %247 = vmatpush2.msra.mxu0 0.0
    %248 = vmatprep.subr.mxu0 0.0
    %249 = vmatpush2.msra.mxu0 0.0
    %250 = vmatprep.subr.mxu0 0.0
    %251 = vmatpush2.msra.mxu0 0.0
    %252 = vmatprep.subr.mxu0 0.0
    %253 = vmatpush2.msra.mxu0 0.0
    %254 = vmatprep.mubr.f32.mxu0 0.0
    %255 = vmatmul.mubr.f32.gmra.mxu0 %v185
    %v256 = vpop.f32.mrf.mxu0
    %v257 = vadd.f32 %v189, %v256
    %v258 = vpop.f32.mrf.mxu0
    %259 = vdwg.mxu0
    %v260 = vmax.f32 %v257, 0.0
    %v261 = vlaneseq
    %v262 = vshrl.u32 %v261, 7
    %v263 = vsub.s32 0, %v262
    %v264 = vrot.slane %v75, %v263
    %265 = vmatprep.subr.mxu0 0.0
    %266 = vmatpush1.msra.mxu0 %v74
    %267 = vmatprep.subr.mxu0 0.0
    %268 = vmatpush1.msra.mxu0 %v73
    %269 = vmatprep.subr.mxu0 0.0
    %270 = vmatpush1.msra.mxu0 %v72
    %271 = vmatprep.subr.mxu0 0.0
    %272 = vmatpush1.msra.mxu0 %v71
    %273 = vmatprep.subr.mxu0 0.0
    %274 = vmatpush1.msra.mxu0 %v70
    %275 = vmatprep.subr.mxu0 0.0
    %276 = vmatpush1.msra.mxu0 %v69
    %277 = vmatprep.subr.mxu0 0.0
    %278 = vmatpush1.msra.mxu0 %v68
    %279 = vmatprep.subr.mxu0 0.0
    %280 = vmatpush1.msra.mxu0 %v67
    %281 = vmatprep.subr.mxu0 0.0
    %282 = vmatpush1.msra.mxu0 %v66
    %283 = vmatprep.subr.mxu0 0.0
    %284 = vmatpush1.msra.mxu0 %v65
    %285 = vmatprep.subr.mxu0 0.0
    %286 = vmatpush1.msra.mxu0 %v64
    %287 = vmatprep.subr.mxu0 0.0
    %288 = vmatpush1.msra.mxu0 %v63
    %289 = vmatprep.subr.mxu0 0.0
    %290 = vmatpush1.msra.mxu0 %v62
    %291 = vmatprep.subr.mxu0 0.0
    %292 = vmatpush1.msra.mxu0 %v61
    %293 = vmatprep.subr.mxu0 0.0
    %294 = vmatpush1.msra.mxu0 %v60
    %295 = vmatprep.subr.mxu0 0.0
    %296 = vmatpush1.msra.mxu0 %v59
    %297 = vmatprep.subr.mxu0 0.0
    %298 = vmatpush2.msra.mxu0 0.0
    %299 = vmatprep.subr.mxu0 0.0
    %300 = vmatpush2.msra.mxu0 0.0
    %301 = vmatprep.subr.mxu0 0.0
    %302 = vmatpush2.msra.mxu0 0.0
    %303 = vmatprep.subr.mxu0 0.0
    %304 = vmatpush2.msra.mxu0 0.0
    %305 = vmatprep.subr.mxu0 0.0
    %306 = vmatpush2.msra.mxu0 0.0
    %307 = vmatprep.subr.mxu0 0.0
    %308 = vmatpush2.msra.mxu0 0.0
    %309 = vmatprep.subr.mxu0 0.0
    %310 = vmatpush2.msra.mxu0 0.0
    %311 = vmatprep.subr.mxu0 0.0
    %312 = vmatpush2.msra.mxu0 0.0
    %313 = vmatprep.subr.mxu0 0.0
    %314 = vmatpush2.msra.mxu0 0.0
    %315 = vmatprep.subr.mxu0 0.0
    %316 = vmatpush2.msra.mxu0 0.0
    %317 = vmatprep.subr.mxu0 0.0
    %318 = vmatpush2.msra.mxu0 0.0
    %319 = vmatprep.subr.mxu0 0.0
    %320 = vmatpush2.msra.mxu0 0.0
    %321 = vmatprep.subr.mxu0 0.0
    %322 = vmatpush2.msra.mxu0 0.0
    %323 = vmatprep.subr.mxu0 0.0
    %324 = vmatpush2.msra.mxu0 0.0
    %325 = vmatprep.subr.mxu0 0.0
    %326 = vmatpush2.msra.mxu0 0.0
    %327 = vmatprep.subr.mxu0 0.0
    %328 = vmatpush2.msra.mxu0 0.0
    %329 = vmatprep.mubr.f32.mxu0 0.0
    %330 = vmatmul.mubr.f32.gmra.mxu0 %v260
    %v331 = vpop.f32.mrf.mxu0
    %v332 = vadd.f32 %v264, %v331
    %v333 = vpop.f32.mrf.mxu0
    %334 = vdwg.mxu0
    %335 = vst [vmem:[#allocation7] sm:$0xff] %v332
    // Predicated region
    $region18: #{tpu_custom_call.1} parent=1 // pred_check
      _
    $region19: #{tpu_custom_call.1} parent=1 // pred_check_branch
      %337 = sbr.rel (0) target = $region21
    $region20: #{tpu_custom_call.1} parent=1 // pred_region
      %s339 = ssub.s32 128, 128
      %340 = vsyncadd [#allocation4], %s339
      %s342 = sshll.u32 [#allocation7], 4
      %s343 = int_to_ptr.vmem [resolvable:$true] %s342
      %345 = dma.vmem_to_hbm [thread:$0]  %s343, 128, %s2, [#allocation4]
    $region21: #{tpu_custom_call.1} parent=1 // pred_fallthru
      _
    // Predicated region
    $region22: #{tpu_custom_call.1} parent=1 // pred_check
      _
    $region23: #{tpu_custom_call.1} parent=1 // pred_check_branch
      %347 = sbr.rel (0) target = $region25
    $region24: #{tpu_custom_call.1} parent=1 // pred_region
      %348 = dma.done [#allocation4], 128
    $region25: #{tpu_custom_call.1} parent=1 // pred_fallthru
      _
    %349 = vsyncpa [#allocation3], 1
    %350 = vsyncpa [#allocation6], 1
    %351 = vsyncpa [#allocation4], 1

</llo_original>
